<compile_context>
chip_gen: v6e
topology: v6e:2x2x1
jax: 0.10.0
libtpu: 0.0.40
codegen_flags: <defaults>
</compile_context>

<pallas_src>
import functools
import numpy as np
import jax
import jax.numpy as jnp
from jax.experimental import pallas as pl
from jax.experimental.pallas import tpu as pltpu

BN_EPS = 1e-5


def _round_up(x, m):
    return (x + m - 1) // m * m


def _pick_row_tile(oh, wp8, cap=1024):
    """Largest multiple of wp8 that divides oh*wp8 and is <= cap."""
    mq = oh * wp8
    if mq <= cap:
        return mq
    best = wp8
    for d in range(2, oh + 1):
        if oh % d == 0 and d * wp8 <= cap:
            best = d * wp8
    return best


# ------------------------------ Pallas kernels ------------------------------

def _make_gemm_kernel(relu, has_res, single_k):
    """Tiled matmul; epilogue adds shift (+residual) (+ReLU).

    single_k: one reduction step -> no fp32 VMEM accumulator round-trip.
    multi-k : k==0 assigns the accumulator (no zero-init store), later steps
              accumulate, last step runs the epilogue.
    """
    def kernel(a_ref, b_ref, sh_ref, *rest):
        if has_res:
            r_ref, o_ref = rest[0], rest[1]
            acc_ref = None if single_k else rest[2]
        else:
            o_ref = rest[0]
            acc_ref = None if single_k else rest[1]

        p = jnp.dot(a_ref[...], b_ref[...], preferred_element_type=jnp.float32)

        def epilogue(acc):
            y = acc + sh_ref[...]
            if has_res:
                y = y + r_ref[...].astype(jnp.float32)
            if relu:
                y = jnp.maximum(y, 0.0)
            o_ref[...] = y.astype(o_ref.dtype)

        if single_k:
            epilogue(p)
        else:
            k = pl.program_id(2)

            @pl.when(k == 0)
            def _():
                acc_ref[...] = p

            @pl.when(k > 0)
            def _():
                acc_ref[...] += p

            @pl.when(k == pl.num_programs(2) - 1)
            def _():
                epilogue(acc_ref[...])

    return kernel


def _conv_s1_kernel(x_ref, w_ref, sh_ref, o_ref, acc_ref, *, kh, wp8, tmq, relu):
    """Direct stride-1 KHxKW conv with the KW width shifts folded into channels.

    x_ref : (1, L, KW*Cin) bf16 — flattened padded image (rows = hp*wp8), width
            shifts concatenated along channels; resident across row/cout tiles.
    w_ref : (KH, KW*Cin, TCout) bf16
    sh_ref: (1, TCout) fp32
    o_ref : (1, TMQ, TCout)
    Row tile r covers output rows [r*TMQ, (r+1)*TMQ); tap di reads the
    8-aligned window x_ref[0, r*TMQ + di*wp8 : ... + TMQ, :].
    """
    r = pl.program_id(2)
    for di in range(kh):
        start = pl.multiple_of(r * tmq + di * wp8, 8)
        a = x_ref[0, pl.ds(start, tmq), :]                 # (TMQ, KW*Cin) bf16
        p = jnp.dot(a, w_ref[di], preferred_element_type=jnp.float32)
        if di == 0:
            acc_ref[...] = p
        else:
            acc_ref[...] += p
    y = acc_ref[...] + sh_ref[...]
    if relu:
        y = jnp.maximum(y, 0.0)
    o_ref[...] = y[None, :, :].astype(o_ref.dtype)


def _max3_kernel(x_ref, o_ref):
    o_ref[...] = jnp.max(x_ref[...], axis=0)


# ------------------------------ Pallas wrappers ------------------------------

def _gemm(a, b, shift, *, relu, residual=None, out_dtype=jnp.bfloat16):
    """(M,K)@(K,N) + shift (+residual) (+ReLU), bf16 operands / fp32 accumulate."""
    M, K = a.shape
    _, N = b.shape
    K_p = _round_up(K, 128)
    N_p = _round_up(N, 128)
    tk = 128
    for cand in (512, 384, 256):
        if K_p % cand == 0:
            tk = cand
            break
    tn = 128
    for cand in (512, 256):
        if N_p % cand == 0:
            tn = cand
            break
    tm = 512 if M >= 512 else _round_up(M, 16)
    M_p = _round_up(M, tm)
    nk = K_p // tk
    single_k = nk == 1
    has_res = residual is not None

    a = jnp.pad(a.astype(jnp.bfloat16), ((0, M_p - M), (0, K_p - K)))
    b = jnp.pad(b.astype(jnp.bfloat16), ((0, K_p - K), (0, N_p - N)))
    sh = jnp.pad(shift.astype(jnp.float32), (0, N_p - N)).reshape(1, N_p)

    inputs = [a, b, sh]
    if single_k:
        grid = (M_p // tm, N_p // tn)
        in_specs = [pl.BlockSpec((tm, tk), lambda i, j: (i, 0)),
                    pl.BlockSpec((tk, tn), lambda i, j: (0, j)),
                    pl.BlockSpec((1, tn), lambda i, j: (0, j))]
        out_spec = pl.BlockSpec((tm, tn), lambda i, j: (i, j))
        scratch = []
        dims = ("parallel", "parallel")
        if has_res:
            in_specs.append(pl.BlockSpec((tm, tn), lambda i, j: (i, j)))
    else:
        grid = (M_p // tm, N_p // tn, nk)
        in_specs = [pl.BlockSpec((tm, tk), lambda i, j, k: (i, k)),
                    pl.BlockSpec((tk, tn), lambda i, j, k: (k, j)),
                    pl.BlockSpec((1, tn), lambda i, j, k: (0, j))]
        out_spec = pl.BlockSpec((tm, tn), lambda i, j, k: (i, j))
        scratch = [pltpu.VMEM((tm, tn), jnp.float32)]
        dims = ("parallel", "parallel", "arbitrary")
        if has_res:
            in_specs.append(pl.BlockSpec((tm, tn), lambda i, j, k: (i, j)))
    if has_res:
        r = jnp.pad(residual.astype(jnp.bfloat16), ((0, M_p - M), (0, N_p - N)))
        inputs.append(r)

    out = pl.pallas_call(
        _make_gemm_kernel(relu, has_res, single_k),
        out_shape=jax.ShapeDtypeStruct((M_p, N_p), out_dtype),
        grid_spec=pltpu.PrefetchScalarGridSpec(
            num_scalar_prefetch=0,
            grid=grid,
            in_specs=in_specs,
            out_specs=out_spec,
            scratch_shapes=scratch,
        ),
        compiler_params=pltpu.CompilerParams(dimension_semantics=dims),
    )(*inputs)
    return out[:M, :N]


@functools.partial(jax.jit, static_argnames=("stride", "relu"))
def conv1x1(x, w, shift, residual=None, *, stride, relu):
    """1x1 conv in NHWC as a pure GEMM (optionally fused residual add + ReLU)."""
    if stride > 1:
        x = x[:, ::stride, ::stride, :]
    n, h, wd, cin = x.shape
    cout = w.shape[0]
    a = x.reshape(n * h * wd, cin)
    b = jnp.transpose(w.reshape(cout, cin))            # (Cin, Cout)
    res = None if residual is None else residual.reshape(n * h * wd, cout)
    y = _gemm(a, b, shift, relu=relu, residual=res)
    return y.reshape(n, h, wd, cout)


@functools.partial(jax.jit, static_argnames=("pad", "relu", "out_dtype"))
def conv_direct_s1(x, w, shift, *, pad, relu, out_dtype=jnp.bfloat16):
    """Stride-1 KxK conv (NHWC) without im2col: width shifts folded into the
    contraction (K = KW*Cin), row-tiled grid, fp32 accumulate, fused epilogue."""
    n, h, wd, cin = x.shape
    cout, _, kh, kw = w.shape
    hp, wp = h + 2 * pad, wd + 2 * pad
    oh, ow = hp - kh + 1, wp - kw + 1
    wp8 = _round_up(wp, 8)                 # width aligned to sublane granularity
    L = hp * wp8
    mq = oh * wp8                          # output rows over padded width
    tmq = _pick_row_tile(oh, wp8)
    kwcin = kw * cin

    # conv zero padding + width alignment + one extra zero row for the dj shifts
    xp = jnp.pad(x.astype(jnp.bfloat16),
                 ((0, 0), (pad, pad + 1), (pad, wp8 - wd - pad), (0, 0)))
    xf = xp.reshape(n, (hp + 1) * wp8, cin)
    # width shifts concatenated along channels: xs[:, p, dj*Cin + c] = xf[:, p+dj, c]
    xs = jnp.concatenate([xf[:, dj:dj + L, :] for dj in range(kw)], axis=-1)

    cout_p = _round_up(cout, 128)
    tcout = 128
    for cand in (512, 256):
        if cout_p % cand == 0 and tmq * cand * 4 <= (2 << 20):
            tcout = cand
            break
    wmat = jnp.transpose(w, (2, 3, 1, 0)).reshape(kh, kwcin, cout)   # (KH,KW*Cin,Cout)
    wmat = jnp.pad(wmat, ((0, 0), (0, 0), (0, cout_p - cout))).astype(jnp.bfloat16)
    sh = jnp.pad(shift.astype(jnp.float32), (0, cout_p - cout)).reshape(1, cout_p)

    out_bytes = np.dtype(out_dtype).itemsize
    ws = (2 * (L * kwcin * 2 + kh * kwcin * tcout * 2
               + tmq * tcout * out_bytes + cout_p * 4)
          + tmq * tcout * 4)
    vmem_limit = max(32 * 1024 * 1024, int(ws * 1.25))

    y = pl.pallas_call(
        functools.partial(_conv_s1_kernel, kh=kh, wp8=wp8, tmq=tmq, relu=relu),
        out_shape=jax.ShapeDtypeStruct((n, mq, cout_p), out_dtype),
        grid_spec=pltpu.PrefetchScalarGridSpec(
            num_scalar_prefetch=0,
            grid=(n, cout_p // tcout, mq // tmq),
            in_specs=[
                # full padded image stays resident across (cout, row) tiles
                pl.BlockSpec((1, L, kwcin), lambda i, j, r: (i, 0, 0)),
                pl.BlockSpec((kh, kwcin, tcout), lambda i, j, r: (0, 0, j)),
                pl.BlockSpec((1, tcout), lambda i, j, r: (0, j)),
            ],
            out_specs=pl.BlockSpec((1, tmq, tcout), lambda i, j, r: (i, r, j)),
            scratch_shapes=[pltpu.VMEM((tmq, tcout), jnp.float32)],
        ),
        compiler_params=pltpu.CompilerParams(
            dimension_semantics=("parallel", "parallel", "arbitrary"),
            vmem_limit_bytes=vmem_limit),
    )(xs, wmat, sh)
    # crop alignment columns / padded channels
    return y.reshape(n, oh, wp8, cout_p)[:, :, :ow, :cout]


@functools.partial(jax.jit, static_argnames=("stride", "pad", "relu"))
def conv_im2col(x, w, shift, *, stride, pad, relu):
    """Fallback for strided spatial convs: bf16 im2col + GEMM (NHWC)."""
    n, h, wd, cin = x.shape
    cout, _, kh, kw = w.shape
    xp = jnp.pad(x.astype(jnp.bfloat16), ((0, 0), (pad, pad), (pad, pad), (0, 0)))
    oh = (h + 2 * pad - kh) // stride + 1
    ow = (wd + 2 * pad - kw) // stride + 1
    patches = []
    for i in range(kh):
        for j in range(kw):
            patches.append(xp[:, i:i + stride * (oh - 1) + 1:stride,
                              j:j + stride * (ow - 1) + 1:stride, :])
    cols = jnp.concatenate(patches, axis=-1).reshape(n * oh * ow, kh * kw * cin)
    b = jnp.transpose(w, (2, 3, 1, 0)).reshape(kh * kw * cin, cout)
    y = _gemm(cols, b, shift, relu=relu)
    return y.reshape(n, oh, ow, cout)


@jax.jit
def maxpool_3x3_s2_p1(x):
    """3x3/2 max-pool, pad 1: separable (width max fused in XLA on stride-2
    slices, height max of 3 in a small Pallas kernel)."""
    n, h, wd, c = x.shape
    oh = (h - 1) // 2 + 1
    ow = (wd - 1) // 2 + 1
    xp = jnp.pad(x, ((0, 0), (1, 1), (1, 1), (0, 0)), constant_values=-jnp.inf)
    # width-direction max at the stride-2 output columns (fuses in XLA)
    w0 = xp[:, :, 0:2 * ow - 1:2, :]
    w1 = xp[:, :, 1:2 * ow:2, :]
    w2 = xp[:, :, 2:2 * ow + 1:2, :]
    wmax = jnp.maximum(jnp.maximum(w0, w1), w2)          # (n, h+2, ow, c)
    # height-direction max at the stride-2 rows (Pallas 3-way max)
    h0 = wmax[:, 0:2 * oh - 1:2]
    h1 = wmax[:, 1:2 * oh:2]
    h2 = wmax[:, 2:2 * oh + 1:2]
    stacked = jnp.stack([h0, h1, h2], axis=0).reshape(3, -1)
    flat = stacked.shape[1]
    br = 512
    lp = _round_up(flat, br * 128)
    r = lp // 128
    stacked = jnp.pad(stacked, ((0, 0), (0, lp - flat)),
                      constant_values=-jnp.inf).reshape(3, r, 128)
    out = pl.pallas_call(
        _max3_kernel,
        out_shape=jax.ShapeDtypeStruct((r, 128), x.dtype),
        grid_spec=pltpu.PrefetchScalarGridSpec(
            num_scalar_prefetch=0,
            grid=(r // br,),
            in_specs=[pl.BlockSpec((3, br, 128), lambda i: (0, i, 0))],
            out_specs=pl.BlockSpec((br, 128), lambda i: (i, 0)),
        ),
        compiler_params=pltpu.CompilerParams(dimension_semantics=("parallel",)),
    )(stacked)
    return out.reshape(-1)[:flat].reshape(n, oh, ow, c)


# ------------------------------ parameter init ------------------------------

def _kaiming(key, cout, cin, k):
    fan_out = cout * k * k
    return jax.random.normal(key, (cout, cin, k, k), jnp.float32) * np.sqrt(2.0 / fan_out)


def _xavier(key, cout, cin, k):
    fan_in, fan_out = cin * k * k, cout * k * k
    a = np.sqrt(6.0 / (fan_in + fan_out))
    return jax.random.uniform(key, (cout, cin, k, k), jnp.float32, -a, a)


def _bias(key, cout, fan_in):
    bnd = 1.0 / np.sqrt(fan_in)
    return jax.random.uniform(key, (cout,), jnp.float32, -bnd, bnd)


def _fold_bn(w):
    # Eval-mode BatchNorm2d with default params/stats (gamma=1, beta=0, mean=0,
    # var=1): scale = gamma/sqrt(var+eps) folded into the weights, shift goes to
    # the kernel epilogue.  Real checkpoints would plug running stats in here.
    cout = w.shape[0]
    scale = jnp.full((cout,), 1.0 / np.sqrt(1.0 + BN_EPS), jnp.float32)
    shift = jnp.zeros((cout,), jnp.float32)
    return w * scale[:, None, None, None], shift


def _bottleneck_params(key, inplanes, planes, downsample):
    ks = jax.random.split(key, 4)
    p = {"w1": _kaiming(ks[0], planes, inplanes, 1),
         "w2": _kaiming(ks[1], planes, planes, 3),
         "w3": _kaiming(ks[2], planes * 4, planes, 1)}
    if downsample:
        p["wd"] = _kaiming(ks[3], planes * 4, inplanes, 1)
    return p


def init_ssd300_params(key):
    keys = jax.random.split(key, 8)
    P = {"conv1": _kaiming(keys[0], 64, 3, 7)}

    def make_layer(k, inplanes, planes, blocks):
        ks = jax.random.split(k, blocks)
        ps = [_bottleneck_params(ks[0], inplanes, planes, True)]
        for i in range(1, blocks):
            ps.append(_bottleneck_params(ks[i], planes * 4, planes, False))
        return ps

    P["layer1"] = make_layer(keys[1], 64, 64, 3)
    P["layer2"] = make_layer(keys[2], 256, 128, 4)
    P["layer3"] = make_layer(keys[3], 512, 256, 6)

    # additional SSD blocks: (cin, cout, mid, stride of 3x3, padding of 3x3)
    add_cfg = [(1024, 512, 256, 2, 1), (512, 512, 256, 2, 1),
               (512, 256, 128, 2, 1), (256, 256, 128, 1, 0),
               (256, 256, 128, 1, 0)]
    P["add_cfg"] = add_cfg
    adds = []
    aks = jax.random.split(keys[4], len(add_cfg))
    for (cin, cout, mid, _, _), k in zip(add_cfg, aks):
        k1, k2 = jax.random.split(k)
        adds.append({"w1": _xavier(k1, mid, cin, 1),
                     "w2": _xavier(k2, cout, mid, 3)})
    P["additional"] = adds

    out_channels = [1024, 512, 512, 256, 256, 256]
    num_defaults = [4, 6, 6, 6, 4, 4]
    label_num = 81
    locs, confs = [], []
    lks = jax.random.split(keys[5], len(out_channels))
    cks = jax.random.split(keys[6], len(out_channels))
    for oc, nd, lk, ck in zip(out_channels, num_defaults, lks, cks):
        lkw, lkb = jax.random.split(lk)
        ckw, ckb = jax.random.split(ck)
        locs.append({"w": _xavier(lkw, nd * 4, oc, 3),
                     "b": _bias(lkb, nd * 4, oc * 9)})
        confs.append({"w": _xavier(ckw, nd * label_num, oc, 3),
                      "b": _bias(ckb, nd * label_num, oc * 9)})
    P["loc"], P["conf"] = locs, confs
    return P


# ------------------------------- forward pass -------------------------------

def _bottleneck_forward(x, p, stride):
    w1, s1 = _fold_bn(p["w1"])
    w2, s2 = _fold_bn(p["w2"])
    w3, s3 = _fold_bn(p["w3"])

    out = conv1x1(x, w1, s1, stride=1, relu=True)
    if stride == 1:
        out = conv_direct_s1(out, w2, s2, pad=1, relu=True)
    else:
        out = conv_im2col(out, w2, s2, stride=stride, pad=1, relu=True)

    if "wd" in p:
        wd_, sd_ = _fold_bn(p["wd"])
        identity = conv1x1(x, wd_, sd_, stride=stride, relu=False)
    else:
        identity = x
    # conv3 + BN + residual add + ReLU fused into one GEMM epilogue
    return conv1x1(out, w3, s3, identity, stride=1, relu=True)


def ssd300_forward(P, x):
    # ResNet50 feature extractor = children[:7]; conv4_block1 strides forced to (1,1)
    x = jnp.transpose(x, (0, 2, 3, 1)).astype(jnp.bfloat16)          # NCHW -> NHWC
    w1, s1 = _fold_bn(P["conv1"])
    x = conv_im2col(x, w1, s1, stride=2, pad=3, relu=True)
    x = maxpool_3x3_s2_p1(x)
    for bp in P["layer1"]:
        x = _bottleneck_forward(x, bp, stride=1)
    for i, bp in enumerate(P["layer2"]):
        x = _bottleneck_forward(x, bp, stride=2 if i == 0 else 1)
    for bp in P["layer3"]:
        x = _bottleneck_forward(x, bp, stride=1)   # modified stride (1,1)

    detection_feed = [x]
    for (cin, cout, mid, st, pd), ap in zip(P["add_cfg"], P["additional"]):
        wa, sa = _fold_bn(ap["w1"])
        wb, sb = _fold_bn(ap["w2"])
        x = conv1x1(x, wa, sa, stride=1, relu=True)
        if st == 1:
            x = conv_direct_s1(x, wb, sb, pad=pd, relu=True)
        else:
            x = conv_im2col(x, wb, sb, stride=st, pad=pd, relu=True)
        detection_feed.append(x)

    n = detection_feed[0].shape[0]
    locs, confs = [], []
    for feat, lp, cp in zip(detection_feed, P["loc"], P["conf"]):
        nd4 = lp["w"].shape[0]                     # nd * 4
        w_merged = jnp.concatenate([lp["w"], cp["w"]], axis=0)
        b_merged = jnp.concatenate([lp["b"], cp["b"]], axis=0)
        y = conv_direct_s1(feat, w_merged, b_merged, pad=1, relu=False,
                           out_dtype=jnp.float32)                  # NHWC, fp32
        lo = jnp.transpose(y[..., :nd4], (0, 3, 1, 2)).reshape(n, 4, -1)
        co = jnp.transpose(y[..., nd4:], (0, 3, 1, 2)).reshape(n, 81, -1)
        locs.append(lo)
        confs.append(co)
    return jnp.concatenate(locs, axis=2), jnp.concatenate(confs, axis=2)


if __name__ == "__main__":
    key = jax.random.PRNGKey(0)
    pkey, xkey = jax.random.split(key)
    params = init_ssd300_params(pkey)
    # 257x257 is the smallest input for which all six SSD feature maps are
    # non-empty (feature maps: 33,17,9,5,3,1 -> 6766 default boxes).
    x = jax.random.normal(xkey, (2, 3, 257, 257), jnp.float32)
    locs, confs = ssd300_forward(params, x)
    locs, confs = jax.block_until_ready((locs, confs))
    assert locs.shape == (2, 4, 6766), locs.shape
    assert confs.shape == (2, 81, 6766), confs.shape
    print("KERNEL_OK")
</pallas_src>

<mosaic_0001>
module attributes {stable_mosaic.version = 11 : i64} {
  func.func @kernel(%arg0: i32, %arg1: i32, %arg2: memref<512x256xbf16, #tpu.memory_space<vmem>>, %arg3: memref<256x128xbf16, #tpu.memory_space<vmem>>, %arg4: memref<1x128xf32, #tpu.memory_space<vmem>>, %arg5: memref<512x128xbf16, #tpu.memory_space<vmem>>) attributes {dimension_semantics = [#tpu.dimension_semantics<parallel>, #tpu.dimension_semantics<parallel>], iteration_bounds = array<i64: 66, 1>, scalar_prefetch = 0 : i64, scratch_operands = 0 : i64, tpu.core_type = #tpu.core_type<tc>, window_params = [{transform_indices = @transform_0, window_bounds = array<i64: 512, 256>}, {transform_indices = @transform_1, window_bounds = array<i64: 256, 128>}, {transform_indices = @transform_2, window_bounds = array<i64: 1, 128>}, {transform_indices = @transform_3, window_bounds = array<i64: 512, 128>}]} {
    %c0 = arith.constant 0 : index
    %c0_0 = arith.constant 0 : index
    %0 = vector.load %arg2[%c0, %c0_0] : memref<512x256xbf16, #tpu.memory_space<vmem>>, vector<512x256xbf16>
    %c0_1 = arith.constant 0 : index
    %c0_2 = arith.constant 0 : index
    %1 = vector.load %arg3[%c0_1, %c0_2] : memref<256x128xbf16, #tpu.memory_space<vmem>>, vector<256x128xbf16>
    %cst = arith.constant dense<0.000000e+00> : vector<512x128xf32>
    %2 = tpu.matmul %0, %1, %cst {dimension_numbers = #tpu.dot_dimension_numbers<[1], [0], [0], [1], [0, 0, 1, 1], [], []>} : vector<512x256xbf16>, vector<256x128xbf16>, vector<512x128xf32> -> vector<512x128xf32>
    %c0_3 = arith.constant 0 : index
    %c0_4 = arith.constant 0 : index
    %3 = vector.load %arg4[%c0_3, %c0_4] : memref<1x128xf32, #tpu.memory_space<vmem>>, vector<1x128xf32>
    %4 = vector.broadcast %3 : vector<1x128xf32> to vector<512x128xf32>
    %5 = arith.addf %2, %4 : vector<512x128xf32>
    %cst_5 = arith.constant 0.000000e+00 : f32
    %6 = vector.broadcast %cst_5 : f32 to vector<512x128xf32>
    %7 = arith.maximumf %5, %6 : vector<512x128xf32>
    %8 = arith.truncf %7 : vector<512x128xf32> to vector<512x128xbf16>
    %c0_6 = arith.constant 0 : index
    %c0_7 = arith.constant 0 : index
    %9 = vector.load %arg5[%c0_6, %c0_7] : memref<512x128xbf16, #tpu.memory_space<vmem>>, vector<512x128xbf16>
    tpu.vector_store %arg5[%c0_6, %c0_7], %8 {strides = array<i32>} : memref<512x128xbf16, #tpu.memory_space<vmem>>, vector<512x128xbf16>,
    return
  }
  func.func @transform_0(%arg0: i32, %arg1: i32) -> (i32, i32) {
    %c0_i32 = arith.constant 0 : i32
    %c0_i32_0 = arith.constant 0 : i32
    return %arg0, %c0_i32 : i32, i32
  }
  func.func @transform_1(%arg0: i32, %arg1: i32) -> (i32, i32) {
    %c0_i32 = arith.constant 0 : i32
    %c0_i32_0 = arith.constant 0 : i32
    return %c0_i32, %arg1 : i32, i32
  }
  func.func @transform_2(%arg0: i32, %arg1: i32) -> (i32, i32) {
    %c0_i32 = arith.constant 0 : i32
    %c0_i32_0 = arith.constant 0 : i32
    return %c0_i32, %arg1 : i32, i32
  }
  func.func @transform_3(%arg0: i32, %arg1: i32) -> (i32, i32) {
    %c0_i32 = arith.constant 0 : i32
    return %arg0, %arg1 : i32, i32
  }
}

</mosaic_0001>

<llo_original>
// kernel: conv_im2col.1
$region0: #{conv_im2col.1}
  #allocation0 [shape = 'u32[]', space=smem, size = 0x4, offset = 0x4, fixed_abs, tag = 'smem constant byte address 0x4 - core index']
  #allocation1 [shape = 'u32[144,128]{1,0:T(1,128)}', space=vmem, size = 0x12000, scoped, tag = 'internal scratch']
  %s0 = inlined_call_operand.vmem [shape: bf16[33792,256], index: 0, kind: input, shape index: {}]
  %s1 = inlined_call_operand.vmem [shape: bf16[256,128], index: 1, kind: input, shape index: {}]
  %s2 = inlined_call_operand.vmem [shape: f32[1,128], index: 2, kind: input, shape index: {}]
  %s3 = inlined_call_operand.vmem [shape: bf16[33792,128], index: 3, kind: output, shape index: {}]
  %s4 = sld [smem:[#allocation0]]
  $region45: #{conv_im2col.1} parent=0
    _
  %s6 = ssub.s32 1, %s4
  %s7 = scalar_select 0, %s6, %s4
  loop: start=0, step=1, limit=68
  $region2: #{conv_im2col.1} parent=0 // loop_pre_header
    _
  $region3: #{conv_im2col.1} parent=0 // loop_header
    %s9 = sphi 0, %s13
    %p10 = scmp.ge.s32.totalorder %s9, 68
    %s16 = sphi 0, %s28
    %s17 = sphi 0, %s24
    %s18 = sphi 0, %s16
    %s19 = sphi 0, %s17
    %s20 = sphi 0, %s18
    %s21 = sphi 0, %s19
    %s31 = sphi 0, %s33
    %s34 = sphi 0, %s31
    %s35 = sphi 0, %s34
    %s51 = sphi 0, %s35
    %s57 = sphi 0, %s59
    %s60 = sphi 0, %s57
    %s61 = sphi 0, %s60
    %s77 = sphi 0, %s61
    %s83 = sphi 0, %s85
    %s86 = sphi 0, %s83
    %s87 = sphi 0, %s86
    %s103 = sphi 0, %s87
    %s111 = sphi 0, %s113
    %s114 = sphi 0, %s111
    %s115 = sphi 0, %s114
    %s131 = sphi 0, %s115
  $region4: #{conv_im2col.1} parent=0 // loop_header_branch
    %12 = sbr.rel (%p10) target = $region8
  $region5: #{conv_im2col.1} parent=0 // loop_body
    %s14 = ssub.s32 %s9, 1
    %s15 = ssub.s32 %s9, 2
    %s22 = sadd.s32 1, %s17
    %p23 = scmp.ge.s32.totalorder %s22, 1
    %s24 = scalar_select %p23, 0, %s22
    %s25 = sadd.s32 1, %s16
    %s26 = scalar_select %p23, %s25, %s16
    %p27 = scmp.ge.s32.totalorder %s26, 66
    %s28 = scalar_select %p27, 0, %s26
    %s29 = ssub.s32 %s16, %s28
    %p30 = scmp.eq.s32.totalorder %s29, 0
    %s32 = sadd.s32 %s31, 1
    %s33 = scalar_select %p30, %s31, %s32
    %p36 = pneg %p30
    %p37 = scmp.eq.s32.totalorder %s9, 65
    %p38 = por %p36, %p37
    %p39 = scmp.ne.s32.totalorder %s31, %s34
    %p40 = scmp.eq.s32.totalorder %s9, 0
    %p41 = por %p39, %p40
    %p42 = scmp.ne.s32.totalorder %s31, %s34
    %p43 = scmp.eq.s32.totalorder %s14, 65
    %p44 = por %p42, %p43
    %p45 = scmp.ne.s32.totalorder %s34, %s35
    %p46 = scmp.eq.s32.totalorder %s14, 0
    %p47 = por %p45, %p46
    %p48 = scmp.ne.s32.totalorder %s34, %s35
    %p49 = scmp.eq.s32.totalorder %s15, 65
    %p50 = por %p48, %p49
    %p52 = scmp.ne.s32.totalorder %s35, %s51
    %p53 = scmp.eq.s32.totalorder %s15, 0
    %p54 = por %p52, %p53
    %s55 = ssub.s32 %s17, %s24
    %p56 = scmp.eq.s32.totalorder %s55, 0
    %s58 = sadd.s32 %s57, 1
    %s59 = scalar_select %p56, %s57, %s58
    %p62 = pneg %p56
    %p63 = scmp.eq.s32.totalorder %s9, 65
    %p64 = por %p62, %p63
    %p65 = scmp.ne.s32.totalorder %s57, %s60
    %p66 = scmp.eq.s32.totalorder %s9, 0
    %p67 = por %p65, %p66
    %p68 = scmp.ne.s32.totalorder %s57, %s60
    %p69 = scmp.eq.s32.totalorder %s14, 65
    %p70 = por %p68, %p69
    %p71 = scmp.ne.s32.totalorder %s60, %s61
    %p72 = scmp.eq.s32.totalorder %s14, 0
    %p73 = por %p71, %p72
    %p74 = scmp.ne.s32.totalorder %s60, %s61
    %p75 = scmp.eq.s32.totalorder %s15, 65
    %p76 = por %p74, %p75
    %p78 = scmp.ne.s32.totalorder %s61, %s77
    %p79 = scmp.eq.s32.totalorder %s15, 0
    %p80 = por %p78, %p79
    %s81 = ssub.s32 %s17, %s24
    %p82 = scmp.eq.s32.totalorder %s81, 0
    %s84 = sadd.s32 %s83, 1
    %s85 = scalar_select %p82, %s83, %s84
    %p88 = pneg %p82
    %p89 = scmp.eq.s32.totalorder %s9, 65
    %p90 = por %p88, %p89
    %p91 = scmp.ne.s32.totalorder %s83, %s86
    %p92 = scmp.eq.s32.totalorder %s9, 0
    %p93 = por %p91, %p92
    %p94 = scmp.ne.s32.totalorder %s83, %s86
    %p95 = scmp.eq.s32.totalorder %s14, 65
    %p96 = por %p94, %p95
    %p97 = scmp.ne.s32.totalorder %s86, %s87
    %p98 = scmp.eq.s32.totalorder %s14, 0
    %p99 = por %p97, %p98
    %p100 = scmp.ne.s32.totalorder %s86, %s87
    %p101 = scmp.eq.s32.totalorder %s15, 65
    %p102 = por %p100, %p101
    %p104 = scmp.ne.s32.totalorder %s87, %s103
    %p105 = scmp.eq.s32.totalorder %s15, 0
    %p106 = por %p104, %p105
    %s107 = ssub.s32 %s16, %s28
    %s108 = ssub.s32 %s17, %s24
    %s109 = sor.u32 %s107, %s108
    %p110 = scmp.eq.s32.totalorder %s109, 0
    %s112 = sadd.s32 %s111, 1
    %s113 = scalar_select %p110, %s111, %s112
    %p116 = pneg %p110
    %p117 = scmp.eq.s32.totalorder %s9, 65
    %p118 = por %p116, %p117
    %p119 = scmp.ne.s32.totalorder %s111, %s114
    %p120 = scmp.eq.s32.totalorder %s9, 0
    %p121 = por %p119, %p120
    %p122 = scmp.ne.s32.totalorder %s111, %s114
    %p123 = scmp.eq.s32.totalorder %s14, 65
    %p124 = por %p122, %p123
    %p125 = scmp.ne.s32.totalorder %s114, %s115
    %p126 = scmp.eq.s32.totalorder %s14, 0
    %p127 = por %p125, %p126
    %p128 = scmp.ne.s32.totalorder %s114, %s115
    %p129 = scmp.eq.s32.totalorder %s15, 65
    %p130 = por %p128, %p129
    %p132 = scmp.ne.s32.totalorder %s115, %s131
    %p133 = scmp.eq.s32.totalorder %s15, 0
    %p134 = por %p132, %p133
    %p135 = scmp.le.s32.totalorder 1, %s9
    %p136 = scmp.lt.s32.totalorder %s9, 67
    %p137 = pnand %p135, %p136
    %p138 = pneg %p137
    // Predicated region
    $region9: #{conv_im2col.1} parent=5 // pred_check
      _
    $region10: #{conv_im2col.1} parent=5 // pred_check_branch
      %140 = sbr.rel (%p137) target = $region12
    $region11: #{conv_im2col.1} parent=5 // pred_region
      %s141 = ssub.s32 %s9, 1
      // Predicated region
      $region13: #{conv_im2col.1} parent=11 // pred_check
        %p142 = pneg %p73
      $region14: #{conv_im2col.1} parent=11 // pred_check_branch
        %144 = sbr.rel (%p142) target = $region16
      $region15: #{conv_im2col.1} parent=11 // pred_region
        %p145 = scmp.lt.s32.totalorder %s19, 0
        %s146 = scalar_select %p145, %s19, 0
        %s147 = smul.addr %s146, 4
        %s148 = scalar_lea.vmem %s1, %s147
      $region16: #{conv_im2col.1} parent=11 // pred_fallthru
        _
      // Predicated region
      $region17: #{conv_im2col.1} parent=11 // pred_check
        %p149 = pneg %p99
      $region18: #{conv_im2col.1} parent=11 // pred_check_branch
        %151 = sbr.rel (%p149) target = $region20
      $region19: #{conv_im2col.1} parent=11 // pred_region
        %p152 = scmp.lt.s32.totalorder %s19, 0
        %s153 = scalar_select %p152, %s19, 0
        %s154 = scalar_lea.vmem %s2, %s153
      $region20: #{conv_im2col.1} parent=11 // pred_fallthru
        _
    $region12: #{conv_im2col.1} parent=5 // pred_fallthru
      _
    %p155 = scmp.lt.s32.totalorder %s9, 66
    // Predicated region
    $region21: #{conv_im2col.1} parent=5 // pred_check
      %p156 = pneg %p155
    $region22: #{conv_im2col.1} parent=5 // pred_check_branch
      %158 = sbr.rel (%p156) target = $region24
    $region23: #{conv_im2col.1} parent=5 // pred_region
      // Predicated region
      $region25: #{conv_im2col.1} parent=23 // pred_check
        %p159 = pneg %p41
      $region26: #{conv_im2col.1} parent=23 // pred_check_branch
        %161 = sbr.rel (%p159) target = $region28
      $region27: #{conv_im2col.1} parent=23 // pred_region
        %s162 = smul.u32 64, %s16
        %p163 = scmp.lt.s32.totalorder %s162, 4223
        %s164 = scalar_select %p163, %s162, 4223
        %s165 = smul.addr %s164, 2
        %s166 = smul.addr %s165, 4
        %s167 = scalar_lea.vmem %s0, %s166
        %s168 = smul.u32 64, %s16
      $region28: #{conv_im2col.1} parent=23 // pred_fallthru
        _
    $region24: #{conv_im2col.1} parent=5 // pred_fallthru
      _
    %p169 = scmp.le.s32.totalorder 1, %s9
    %p170 = scmp.lt.s32.totalorder %s9, 67
    %p171 = pnand %p169, %p170
    %p172 = pneg %p171
    // Predicated region
    $region29: #{conv_im2col.1} parent=5 // pred_check
      _
    $region30: #{conv_im2col.1} parent=5 // pred_check_branch
      %174 = sbr.rel (%p171) target = $region32
    $region31: #{conv_im2col.1} parent=5 // pred_region
      %s175 = ssub.s32 %s9, 1
      %s176 = smul.u32 64, %s18
      %p177 = scmp.lt.s32.totalorder %s176, 4223
      %s178 = scalar_select %p177, %s176, 4223
      %s179 = smul.addr %s178, 2
      %s180 = smul.addr %s179, 4
      %s181 = scalar_lea.vmem %s0, %s180
      %p182 = pneg %p47
      %p183 = pneg %p44
      %p184 = scmp.lt.s32.totalorder %s19, 0
      %s185 = scalar_select %p184, %s19, 0
      %s186 = smul.addr %s185, 4
      %s187 = scalar_lea.vmem %s1, %s186
      %p188 = pneg %p73
      %p189 = pneg %p70
      %p190 = scmp.lt.s32.totalorder %s19, 0
      %s191 = scalar_select %p190, %s19, 0
      %s192 = scalar_lea.vmem %s2, %s191
      %p193 = pneg %p99
      %p194 = pneg %p96
      %p195 = pneg %p127
      %p196 = pneg %p124
      %s197 = smul.u32 64, %s18
      %p198 = scmp.lt.s32.totalorder %s197, 4223
      %s199 = scalar_select %p198, %s197, 4223
      %p200 = scmp.lt.s32.totalorder %s19, 0
      %s201 = scalar_select %p200, %s19, 0
      %s202 = sadd.s32 %s201, %s199
      %s203 = smul.addr %s202, 4
      %s204 = scalar_lea.vmem %s3, %s203
      %s205 = smul.u32 64, %s18
      %p206 = scmp.lt.s32.totalorder %s205, 4223
      %s207 = scalar_select %p206, %s205, 4223
      %s208 = smul.addr %s207, 2
      %s209 = smul.addr %s208, 4
      %s210 = scalar_lea.vmem %s0, %s209
      %s211 = smul.u32 64, %s18
      %p212 = scmp.lt.s32.totalorder %s19, 0
      %s213 = scalar_select %p212, %s19, 0
      %s214 = smul.addr %s213, 4
      %s215 = scalar_lea.vmem %s1, %s214
      %p216 = scmp.lt.s32.totalorder %s19, 0
      %s217 = scalar_select %p216, %s19, 0
      %s218 = scalar_lea.vmem %s2, %s217
      %s219 = smul.u32 64, %s18
      %p220 = scmp.lt.s32.totalorder %s219, 4223
      %s221 = scalar_select %p220, %s219, 4223
      %p222 = scmp.lt.s32.totalorder %s19, 0
      %s223 = scalar_select %p222, %s19, 0
      %s224 = sadd.s32 %s223, %s221
      %s225 = smul.addr %s224, 4
      %s226 = scalar_lea.vmem %s3, %s225
      %s227 = smul.u32 64, %s18
      %v229 = vld [vmem:[%s210] sm:$0xff]
      %v230 = vld [vmem:[%s210 + $0x8] sm:$0xff]
      %v231 = vld [vmem:[%s210 + $0x10] sm:$0xff]
      %v232 = vld [vmem:[%s210 + $0x18] sm:$0xff]
      %v233 = vld [vmem:[%s210 + $0x20] sm:$0xff]
      %v234 = vld [vmem:[%s210 + $0x28] sm:$0xff]
      %v235 = vld [vmem:[%s210 + $0x30] sm:$0xff]
      %v236 = vld [vmem:[%s210 + $0x38] sm:$0xff]
      %v237 = vld [vmem:[%s210 + $0x40] sm:$0xff]
      %v238 = vld [vmem:[%s210 + $0x48] sm:$0xff]
      %v239 = vld [vmem:[%s210 + $0x50] sm:$0xff]
      %v240 = vld [vmem:[%s210 + $0x58] sm:$0xff]
      %v241 = vld [vmem:[%s210 + $0x60] sm:$0xff]
      %v242 = vld [vmem:[%s210 + $0x68] sm:$0xff]
      %v243 = vld [vmem:[%s210 + $0x70] sm:$0xff]
      %v244 = vld [vmem:[%s210 + $0x78] sm:$0xff]
      %v245 = vld [vmem:[%s210 + $0x80] sm:$0xff]
      %v246 = vld [vmem:[%s210 + $0x88] sm:$0xff]
      %v247 = vld [vmem:[%s210 + $0x90] sm:$0xff]
      %v248 = vld [vmem:[%s210 + $0x98] sm:$0xff]
      %v249 = vld [vmem:[%s210 + $0xa0] sm:$0xff]
      %v250 = vld [vmem:[%s210 + $0xa8] sm:$0xff]
      %v251 = vld [vmem:[%s210 + $0xb0] sm:$0xff]
      %v252 = vld [vmem:[%s210 + $0xb8] sm:$0xff]
      %v253 = vld [vmem:[%s210 + $0xc0] sm:$0xff]
      %v254 = vld [vmem:[%s210 + $0xc8] sm:$0xff]
      %v255 = vld [vmem:[%s210 + $0xd0] sm:$0xff]
      %v256 = vld [vmem:[%s210 + $0xd8] sm:$0xff]
      %v257 = vld [vmem:[%s210 + $0xe0] sm:$0xff]
      %v258 = vld [vmem:[%s210 + $0xe8] sm:$0xff]
      %v259 = vld [vmem:[%s210 + $0xf0] sm:$0xff]
      %v260 = vld [vmem:[%s210 + $0xf8] sm:$0xff]
      %v261 = vld [vmem:[%s210 + $0x100] sm:$0xff]
      %v262 = vld [vmem:[%s210 + $0x108] sm:$0xff]
      %v263 = vld [vmem:[%s210 + $0x110] sm:$0xff]
      %v264 = vld [vmem:[%s210 + $0x118] sm:$0xff]
      %v265 = vld [vmem:[%s210 + $0x120] sm:$0xff]
      %v266 = vld [vmem:[%s210 + $0x128] sm:$0xff]
      %v267 = vld [vmem:[%s210 + $0x130] sm:$0xff]
      %v268 = vld [vmem:[%s210 + $0x138] sm:$0xff]
      %v269 = vld [vmem:[%s210 + $0x140] sm:$0xff]
      %v270 = vld [vmem:[%s210 + $0x148] sm:$0xff]
      %v271 = vld [vmem:[%s210 + $0x150] sm:$0xff]
      %v272 = vld [vmem:[%s210 + $0x158] sm:$0xff]
      %v273 = vld [vmem:[%s210 + $0x160] sm:$0xff]
      %v274 = vld [vmem:[%s210 + $0x168] sm:$0xff]
      %v275 = vld [vmem:[%s210 + $0x170] sm:$0xff]
      %v276 = vld [vmem:[%s210 + $0x178] sm:$0xff]
      %v277 = vld [vmem:[%s210 + $0x180] sm:$0xff]
      %v278 = vld [vmem:[%s210 + $0x188] sm:$0xff]
      %v279 = vld [vmem:[%s210 + $0x190] sm:$0xff]
      %v280 = vld [vmem:[%s210 + $0x198] sm:$0xff]
      %v281 = vld [vmem:[%s210 + $0x1a0] sm:$0xff]
      %v282 = vld [vmem:[%s210 + $0x1a8] sm:$0xff]
      %v283 = vld [vmem:[%s210 + $0x1b0] sm:$0xff]
      %v284 = vld [vmem:[%s210 + $0x1b8] sm:$0xff]
      %v285 = vld [vmem:[%s210 + $0x1c0] sm:$0xff]
      %v286 = vld [vmem:[%s210 + $0x1c8] sm:$0xff]
      %v287 = vld [vmem:[%s210 + $0x1d0] sm:$0xff]
      %v288 = vld [vmem:[%s210 + $0x1d8] sm:$0xff]
      %v289 = vld [vmem:[%s210 + $0x1e0] sm:$0xff]
      %v290 = vld [vmem:[%s210 + $0x1e8] sm:$0xff]
      %v291 = vld [vmem:[%s210 + $0x1f0] sm:$0xff]
      %v292 = vld [vmem:[%s210 + $0x1f8] sm:$0xff]
      %v293 = vld [vmem:[%s215] sm:$0xf]
      %v294 = vld [vmem:[%s215 + $0x4] sm:$0xf]
      %v295 = vld [vmem:[%s215 + $0x8] sm:$0xf]
      %v296 = vld [vmem:[%s215 + $0xc] sm:$0xf]
      %v297 = vld [vmem:[%s215 + $0x10] sm:$0xf]
      %v298 = vld [vmem:[%s215 + $0x14] sm:$0xf]
      %v299 = vld [vmem:[%s215 + $0x18] sm:$0xf]
      %v300 = vld [vmem:[%s215 + $0x1c] sm:$0xf]
      %v301 = vld [vmem:[%s215 + $0x20] sm:$0xf]
      %v302 = vld [vmem:[%s215 + $0x24] sm:$0xf]
      %v303 = vld [vmem:[%s215 + $0x28] sm:$0xf]
      %v304 = vld [vmem:[%s215 + $0x2c] sm:$0xf]
      %v305 = vld [vmem:[%s215 + $0x30] sm:$0xf]
      %v306 = vld [vmem:[%s215 + $0x34] sm:$0xf]
      %v307 = vld [vmem:[%s215 + $0x38] sm:$0xf]
      %v308 = vld [vmem:[%s215 + $0x3c] sm:$0xf]
      %v309 = vld [vmem:[%s215 + $0x40] sm:$0xf]
      %v310 = vld [vmem:[%s215 + $0x44] sm:$0xf]
      %v311 = vld [vmem:[%s215 + $0x48] sm:$0xf]
      %v312 = vld [vmem:[%s215 + $0x4c] sm:$0xf]
      %v313 = vld [vmem:[%s215 + $0x50] sm:$0xf]
      %v314 = vld [vmem:[%s215 + $0x54] sm:$0xf]
      %v315 = vld [vmem:[%s215 + $0x58] sm:$0xf]
      %v316 = vld [vmem:[%s215 + $0x5c] sm:$0xf]
      %v317 = vld [vmem:[%s215 + $0x60] sm:$0xf]
      %v318 = vld [vmem:[%s215 + $0x64] sm:$0xf]
      %v319 = vld [vmem:[%s215 + $0x68] sm:$0xf]
      %v320 = vld [vmem:[%s215 + $0x6c] sm:$0xf]
      %v321 = vld [vmem:[%s215 + $0x70] sm:$0xf]
      %v322 = vld [vmem:[%s215 + $0x74] sm:$0xf]
      %v323 = vld [vmem:[%s215 + $0x78] sm:$0xf]
      %v324 = vld [vmem:[%s215 + $0x7c] sm:$0xf]
      %v325 = vld [vmem:[%s218] sm:$0x1]
      %v327 = vlaneseq
      %v328 = vshrl.u32 %v327, 7
      %v329 = vsub.s32 0, %v328
      %v330 = vrot.slane %v325, %v329
      %v396 = vunpack.c.l.b16 %v229
      %v397 = vunpack.c.h.b16 %v229
      %v398 = vunpack.c.l.b16 %v230
      %v399 = vunpack.c.h.b16 %v230
      %v400 = vunpack.c.l.b16 %v231
      %v401 = vunpack.c.h.b16 %v231
      %v402 = vunpack.c.l.b16 %v232
      %v403 = vunpack.c.h.b16 %v232
      %v404 = vunpack.c.l.b16 %v233
      %v405 = vunpack.c.h.b16 %v233
      %v406 = vunpack.c.l.b16 %v234
      %v407 = vunpack.c.h.b16 %v234
      %v408 = vunpack.c.l.b16 %v235
      %v409 = vunpack.c.h.b16 %v235
      %v410 = vunpack.c.l.b16 %v236
      %v411 = vunpack.c.h.b16 %v236
      %v412 = vunpack.c.l.b16 %v237
      %v413 = vunpack.c.h.b16 %v237
      %v414 = vunpack.c.l.b16 %v238
      %v415 = vunpack.c.h.b16 %v238
      %v416 = vunpack.c.l.b16 %v239
      %v417 = vunpack.c.h.b16 %v239
      %v418 = vunpack.c.l.b16 %v240
      %v419 = vunpack.c.h.b16 %v240
      %v420 = vunpack.c.l.b16 %v241
      %v421 = vunpack.c.h.b16 %v241
      %v422 = vunpack.c.l.b16 %v242
      %v423 = vunpack.c.h.b16 %v242
      %v424 = vunpack.c.l.b16 %v243
      %v425 = vunpack.c.h.b16 %v243
      %v426 = vunpack.c.l.b16 %v244
      %v427 = vunpack.c.h.b16 %v244
      %v428 = vunpack.c.l.b16 %v245
      %v429 = vunpack.c.h.b16 %v245
      %v430 = vunpack.c.l.b16 %v246
      %v431 = vunpack.c.h.b16 %v246
      %v432 = vunpack.c.l.b16 %v247
      %v433 = vunpack.c.h.b16 %v247
      %v434 = vunpack.c.l.b16 %v248
      %v435 = vunpack.c.h.b16 %v248
      %v436 = vunpack.c.l.b16 %v249
      %v437 = vunpack.c.h.b16 %v249
      %v438 = vunpack.c.l.b16 %v250
      %v439 = vunpack.c.h.b16 %v250
      %v440 = vunpack.c.l.b16 %v251
      %v441 = vunpack.c.h.b16 %v251
      %v442 = vunpack.c.l.b16 %v252
      %v443 = vunpack.c.h.b16 %v252
      %v444 = vunpack.c.l.b16 %v253
      %v445 = vunpack.c.h.b16 %v253
      %v446 = vunpack.c.l.b16 %v254
      %v447 = vunpack.c.h.b16 %v254
      %v448 = vunpack.c.l.b16 %v255
      %v449 = vunpack.c.h.b16 %v255
      %v450 = vunpack.c.l.b16 %v256
      %v451 = vunpack.c.h.b16 %v256
      %v452 = vunpack.c.l.b16 %v257
      %v453 = vunpack.c.h.b16 %v257
      %v454 = vunpack.c.l.b16 %v258
      %v455 = vunpack.c.h.b16 %v258
      %v456 = vunpack.c.l.b16 %v259
      %v457 = vunpack.c.h.b16 %v259
      %v458 = vunpack.c.l.b16 %v260
      %v459 = vunpack.c.h.b16 %v260
      %v460 = vunpack.c.l.b16 %v261
      %v461 = vunpack.c.h.b16 %v261
      %v462 = vunpack.c.l.b16 %v262
      %v463 = vunpack.c.h.b16 %v262
      %v464 = vunpack.c.l.b16 %v263
      %v465 = vunpack.c.h.b16 %v263
      %v466 = vunpack.c.l.b16 %v264
      %v467 = vunpack.c.h.b16 %v264
      %v468 = vunpack.c.l.b16 %v265
      %v469 = vunpack.c.h.b16 %v265
      %v470 = vunpack.c.l.b16 %v266
      %v471 = vunpack.c.h.b16 %v266
      %v472 = vunpack.c.l.b16 %v267
      %v473 = vunpack.c.h.b16 %v267
      %v474 = vunpack.c.l.b16 %v268
      %v475 = vunpack.c.h.b16 %v268
      %v476 = vunpack.c.l.b16 %v269
      %v477 = vunpack.c.h.b16 %v269
      %v478 = vunpack.c.l.b16 %v270
      %v479 = vunpack.c.h.b16 %v270
      %v480 = vunpack.c.l.b16 %v271
      %v481 = vunpack.c.h.b16 %v271
      %v482 = vunpack.c.l.b16 %v272
      %v483 = vunpack.c.h.b16 %v272
      %v484 = vunpack.c.l.b16 %v273
      %v485 = vunpack.c.h.b16 %v273
      %v486 = vunpack.c.l.b16 %v274
      %v487 = vunpack.c.h.b16 %v274
      %v488 = vunpack.c.l.b16 %v275
      %v489 = vunpack.c.h.b16 %v275
      %v490 = vunpack.c.l.b16 %v276
      %v491 = vunpack.c.h.b16 %v276
      %v492 = vunpack.c.l.b16 %v277
      %v493 = vunpack.c.h.b16 %v277
      %v494 = vunpack.c.l.b16 %v278
      %v495 = vunpack.c.h.b16 %v278
      %v496 = vunpack.c.l.b16 %v279
      %v497 = vunpack.c.h.b16 %v279
      %v498 = vunpack.c.l.b16 %v280
      %v499 = vunpack.c.h.b16 %v280
      %v500 = vunpack.c.l.b16 %v281
      %v501 = vunpack.c.h.b16 %v281
      %v502 = vunpack.c.l.b16 %v282
      %v503 = vunpack.c.h.b16 %v282
      %v504 = vunpack.c.l.b16 %v283
      %v505 = vunpack.c.h.b16 %v283
      %v506 = vunpack.c.l.b16 %v284
      %v507 = vunpack.c.h.b16 %v284
      %v508 = vunpack.c.l.b16 %v285
      %v509 = vunpack.c.h.b16 %v285
      %v510 = vunpack.c.l.b16 %v286
      %v511 = vunpack.c.h.b16 %v286
      %v512 = vunpack.c.l.b16 %v287
      %v513 = vunpack.c.h.b16 %v287
      %v514 = vunpack.c.l.b16 %v288
      %v515 = vunpack.c.h.b16 %v288
      %v516 = vunpack.c.l.b16 %v289
      %v517 = vunpack.c.h.b16 %v289
      %v518 = vunpack.c.l.b16 %v290
      %v519 = vunpack.c.h.b16 %v290
      %v520 = vunpack.c.l.b16 %v291
      %v521 = vunpack.c.h.b16 %v291
      %v522 = vunpack.c.l.b16 %v292
      %v523 = vunpack.c.h.b16 %v292
      %v524 = vpack.c.b16 %v398, %v396
      %v525 = vpack.c.b16 %v399, %v397
      %v526 = vpack.c.b16 %v402, %v400
      %v527 = vpack.c.b16 %v403, %v401
      %v528 = vpack.c.b16 %v406, %v404
      %v529 = vpack.c.b16 %v407, %v405
      %v530 = vpack.c.b16 %v410, %v408
      %v531 = vpack.c.b16 %v411, %v409
      %v532 = vpack.c.b16 %v414, %v412
      %v533 = vpack.c.b16 %v415, %v413
      %v534 = vpack.c.b16 %v418, %v416
      %v535 = vpack.c.b16 %v419, %v417
      %v536 = vpack.c.b16 %v422, %v420
      %v537 = vpack.c.b16 %v423, %v421
      %v538 = vpack.c.b16 %v426, %v424
      %v539 = vpack.c.b16 %v427, %v425
      %v540 = vpack.c.b16 %v430, %v428
      %v541 = vpack.c.b16 %v431, %v429
      %v542 = vpack.c.b16 %v434, %v432
      %v543 = vpack.c.b16 %v435, %v433
      %v544 = vpack.c.b16 %v438, %v436
      %v545 = vpack.c.b16 %v439, %v437
      %v546 = vpack.c.b16 %v442, %v440
      %v547 = vpack.c.b16 %v443, %v441
      %v548 = vpack.c.b16 %v446, %v444
      %v549 = vpack.c.b16 %v447, %v445
      %v550 = vpack.c.b16 %v450, %v448
      %v551 = vpack.c.b16 %v451, %v449
      %v552 = vpack.c.b16 %v454, %v452
      %v553 = vpack.c.b16 %v455, %v453
      %v554 = vpack.c.b16 %v458, %v456
      %v555 = vpack.c.b16 %v459, %v457
      %v556 = vpack.c.b16 %v462, %v460
      %v557 = vpack.c.b16 %v463, %v461
      %v558 = vpack.c.b16 %v466, %v464
      %v559 = vpack.c.b16 %v467, %v465
      %v560 = vpack.c.b16 %v470, %v468
      %v561 = vpack.c.b16 %v471, %v469
      %v562 = vpack.c.b16 %v474, %v472
      %v563 = vpack.c.b16 %v475, %v473
      %v564 = vpack.c.b16 %v478, %v476
      %v565 = vpack.c.b16 %v479, %v477
      %v566 = vpack.c.b16 %v482, %v480
      %v567 = vpack.c.b16 %v483, %v481
      %v568 = vpack.c.b16 %v486, %v484
      %v569 = vpack.c.b16 %v487, %v485
      %v570 = vpack.c.b16 %v490, %v488
      %v571 = vpack.c.b16 %v491, %v489
      %v572 = vpack.c.b16 %v494, %v492
      %v573 = vpack.c.b16 %v495, %v493
      %v574 = vpack.c.b16 %v498, %v496
      %v575 = vpack.c.b16 %v499, %v497
      %v576 = vpack.c.b16 %v502, %v500
      %v577 = vpack.c.b16 %v503, %v501
      %v578 = vpack.c.b16 %v506, %v504
      %v579 = vpack.c.b16 %v507, %v505
      %v580 = vpack.c.b16 %v510, %v508
      %v581 = vpack.c.b16 %v511, %v509
      %v582 = vpack.c.b16 %v514, %v512
      %v583 = vpack.c.b16 %v515, %v513
      %v584 = vpack.c.b16 %v518, %v516
      %v585 = vpack.c.b16 %v519, %v517
      %v586 = vpack.c.b16 %v522, %v520
      %v587 = vpack.c.b16 %v523, %v521
      %v684 = vunpack.c.l.b16 %v293
      %v685 = vunpack.c.l.b16 %v294
      %v686 = vunpack.c.l.b16 %v295
      %v687 = vunpack.c.l.b16 %v296
      %v688 = vunpack.c.l.b16 %v297
      %v689 = vunpack.c.l.b16 %v298
      %v690 = vunpack.c.l.b16 %v299
      %v691 = vunpack.c.l.b16 %v300
      %v692 = vunpack.c.l.b16 %v301
      %v693 = vunpack.c.l.b16 %v302
      %v694 = vunpack.c.l.b16 %v303
      %v695 = vunpack.c.l.b16 %v304
      %v696 = vunpack.c.l.b16 %v305
      %v697 = vunpack.c.l.b16 %v306
      %v698 = vunpack.c.l.b16 %v307
      %v699 = vunpack.c.l.b16 %v308
      %v700 = vunpack.c.l.b16 %v309
      %v701 = vunpack.c.l.b16 %v310
      %v702 = vunpack.c.l.b16 %v311
      %v703 = vunpack.c.l.b16 %v312
      %v704 = vunpack.c.l.b16 %v313
      %v705 = vunpack.c.l.b16 %v314
      %v706 = vunpack.c.l.b16 %v315
      %v707 = vunpack.c.l.b16 %v316
      %v708 = vunpack.c.l.b16 %v317
      %v709 = vunpack.c.l.b16 %v318
      %v710 = vunpack.c.l.b16 %v319
      %v711 = vunpack.c.l.b16 %v320
      %v712 = vunpack.c.l.b16 %v321
      %v713 = vunpack.c.l.b16 %v322
      %v714 = vunpack.c.l.b16 %v323
      %v715 = vunpack.c.l.b16 %v324
      %v716 = vpack.c.b16 %v685, %v684
      %v717 = vpack.c.b16 %v687, %v686
      %v718 = vpack.c.b16 %v689, %v688
      %v719 = vpack.c.b16 %v691, %v690
      %v720 = vpack.c.b16 %v693, %v692
      %v721 = vpack.c.b16 %v695, %v694
      %v722 = vpack.c.b16 %v697, %v696
      %v723 = vpack.c.b16 %v699, %v698
      %v724 = vpack.c.b16 %v701, %v700
      %v725 = vpack.c.b16 %v703, %v702
      %v726 = vpack.c.b16 %v705, %v704
      %v727 = vpack.c.b16 %v707, %v706
      %v728 = vpack.c.b16 %v709, %v708
      %v729 = vpack.c.b16 %v711, %v710
      %v730 = vpack.c.b16 %v713, %v712
      %v731 = vpack.c.b16 %v715, %v714
      %748 = vmatprep.subr.bf16.mxu0 0
      %749 = vmatpush1.bf16.msra.mxu0 %v723
      %750 = vmatprep.subr.bf16.mxu0 0
      %751 = vmatpush1.bf16.msra.mxu0 %v722
      %752 = vmatprep.subr.bf16.mxu0 0
      %753 = vmatpush1.bf16.msra.mxu0 %v721
      %754 = vmatprep.subr.bf16.mxu0 0
      %755 = vmatpush1.bf16.msra.mxu0 %v720
      %756 = vmatprep.subr.bf16.mxu0 0
      %757 = vmatpush1.bf16.msra.mxu0 %v719
      %758 = vmatprep.subr.bf16.mxu0 0
      %759 = vmatpush1.bf16.msra.mxu0 %v718
      %760 = vmatprep.subr.bf16.mxu0 0
      %761 = vmatpush1.bf16.msra.mxu0 %v717
      %762 = vmatprep.subr.bf16.mxu0 0
      %763 = vmatpush1.bf16.msra.mxu0 %v716
      %764 = vmatprep.subr.bf16.mxu0 0
      %765 = vmatpush2.bf16.msra.mxu0 %v731
      %766 = vmatprep.subr.bf16.mxu0 0
      %767 = vmatpush2.bf16.msra.mxu0 %v730
      %768 = vmatprep.subr.bf16.mxu0 0
      %769 = vmatpush2.bf16.msra.mxu0 %v729
      %770 = vmatprep.subr.bf16.mxu0 0
      %771 = vmatpush2.bf16.msra.mxu0 %v728
      %772 = vmatprep.subr.bf16.mxu0 0
      %773 = vmatpush2.bf16.msra.mxu0 %v727
      %774 = vmatprep.subr.bf16.mxu0 0
      %775 = vmatpush2.bf16.msra.mxu0 %v726
      %776 = vmatprep.subr.bf16.mxu0 0
      %777 = vmatpush2.bf16.msra.mxu0 %v725
      %778 = vmatprep.subr.bf16.mxu0 0
      %779 = vmatpush2.bf16.msra.mxu0 %v724
      %780 = vmatprep.mubr.bf16.mxu0 %v525
      %781 = vmatmul.mubr.bf16.gmra.mxu0 %v524
      %v782 = vpop.f32.mrf.mxu0
      %v783 = vadd.f32 %v330, %v782
      %v784 = vpop.f32.mrf.mxu0
      %v785 = vpop.f32.mrf.mxu0
      %v786 = vadd.f32 %v330, %v785
      %v787 = vpop.f32.mrf.mxu0
      %788 = vmatprep.mubr.bf16.mxu0 %v527
      %789 = vmatmul.mubr.bf16.gmra.mxu0 %v526
      %v790 = vpop.f32.mrf.mxu0
      %v791 = vadd.f32 %v330, %v790
      %v792 = vpop.f32.mrf.mxu0
      %v793 = vpop.f32.mrf.mxu0
      %v794 = vadd.f32 %v330, %v793
      %v795 = vpop.f32.mrf.mxu0
      %796 = vmatprep.mubr.bf16.mxu0 %v529
      %797 = vmatmul.mubr.bf16.gmra.mxu0 %v528
      %v798 = vpop.f32.mrf.mxu0
      %v799 = vadd.f32 %v330, %v798
      %v800 = vpop.f32.mrf.mxu0
      %v801 = vpop.f32.mrf.mxu0
      %v802 = vadd.f32 %v330, %v801
      %v803 = vpop.f32.mrf.mxu0
      %804 = vmatprep.mubr.bf16.mxu0 %v531
      %805 = vmatmul.mubr.bf16.gmra.mxu0 %v530
      %v806 = vpop.f32.mrf.mxu0
      %v807 = vadd.f32 %v330, %v806
      %v808 = vpop.f32.mrf.mxu0
      %v809 = vpop.f32.mrf.mxu0
      %v810 = vadd.f32 %v330, %v809
      %v811 = vpop.f32.mrf.mxu0
      %812 = vmatprep.mubr.bf16.mxu0 %v533
      %813 = vmatmul.mubr.bf16.gmra.mxu0 %v532
      %v814 = vpop.f32.mrf.mxu0
      %v815 = vadd.f32 %v330, %v814
      %v816 = vpop.f32.mrf.mxu0
      %v817 = vpop.f32.mrf.mxu0
      %v818 = vadd.f32 %v330, %v817
      %v819 = vpop.f32.mrf.mxu0
      %820 = vmatprep.mubr.bf16.mxu0 %v535
      %821 = vmatmul.mubr.bf16.gmra.mxu0 %v534
      %v822 = vpop.f32.mrf.mxu0
      %v823 = vadd.f32 %v330, %v822
      %v824 = vpop.f32.mrf.mxu0
      %v825 = vpop.f32.mrf.mxu0
      %v826 = vadd.f32 %v330, %v825
      %v827 = vpop.f32.mrf.mxu0
      %828 = vmatprep.mubr.bf16.mxu0 %v537
      %829 = vmatmul.mubr.bf16.gmra.mxu0 %v536
      %v830 = vpop.f32.mrf.mxu0
      %v831 = vadd.f32 %v330, %v830
      %v832 = vpop.f32.mrf.mxu0
      %v833 = vpop.f32.mrf.mxu0
      %v834 = vadd.f32 %v330, %v833
      %v835 = vpop.f32.mrf.mxu0
      %836 = vmatprep.mubr.bf16.mxu0 %v539
      %837 = vmatmul.mubr.bf16.gmra.mxu0 %v538
      %v838 = vpop.f32.mrf.mxu0
      %v839 = vadd.f32 %v330, %v838
      %v840 = vpop.f32.mrf.mxu0
      %v841 = vpop.f32.mrf.mxu0
      %v842 = vadd.f32 %v330, %v841
      %v843 = vpop.f32.mrf.mxu0
      %844 = vmatprep.mubr.bf16.mxu0 %v541
      %845 = vmatmul.mubr.bf16.gmra.mxu0 %v540
      %v846 = vpop.f32.mrf.mxu0
      %v847 = vadd.f32 %v330, %v846
      %v848 = vpop.f32.mrf.mxu0
      %v849 = vpop.f32.mrf.mxu0
      %v850 = vadd.f32 %v330, %v849
      %v851 = vpop.f32.mrf.mxu0
      %852 = vmatprep.mubr.bf16.mxu0 %v543
      %853 = vmatmul.mubr.bf16.gmra.mxu0 %v542
      %v854 = vpop.f32.mrf.mxu0
      %v855 = vadd.f32 %v330, %v854
      %v856 = vpop.f32.mrf.mxu0
      %v857 = vpop.f32.mrf.mxu0
      %v858 = vadd.f32 %v330, %v857
      %v859 = vpop.f32.mrf.mxu0
      %860 = vmatprep.mubr.bf16.mxu0 %v545
      %861 = vmatmul.mubr.bf16.gmra.mxu0 %v544
      %v862 = vpop.f32.mrf.mxu0
      %v863 = vadd.f32 %v330, %v862
      %v864 = vpop.f32.mrf.mxu0
      %v865 = vpop.f32.mrf.mxu0
      %v866 = vadd.f32 %v330, %v865
      %v867 = vpop.f32.mrf.mxu0
      %868 = vmatprep.mubr.bf16.mxu0 %v547
      %869 = vmatmul.mubr.bf16.gmra.mxu0 %v546
      %v870 = vpop.f32.mrf.mxu0
      %v871 = vadd.f32 %v330, %v870
      %v872 = vpop.f32.mrf.mxu0
      %v873 = vpop.f32.mrf.mxu0
      %v874 = vadd.f32 %v330, %v873
      %v875 = vpop.f32.mrf.mxu0
      %876 = vmatprep.mubr.bf16.mxu0 %v549
      %877 = vmatmul.mubr.bf16.gmra.mxu0 %v548
      %v878 = vpop.f32.mrf.mxu0
      %v879 = vadd.f32 %v330, %v878
      %v880 = vpop.f32.mrf.mxu0
      %v881 = vpop.f32.mrf.mxu0
      %v882 = vadd.f32 %v330, %v881
      %v883 = vpop.f32.mrf.mxu0
      %884 = vmatprep.mubr.bf16.mxu0 %v551
      %885 = vmatmul.mubr.bf16.gmra.mxu0 %v550
      %v886 = vpop.f32.mrf.mxu0
      %v887 = vadd.f32 %v330, %v886
      %v888 = vpop.f32.mrf.mxu0
      %v889 = vpop.f32.mrf.mxu0
      %v890 = vadd.f32 %v330, %v889
      %v891 = vpop.f32.mrf.mxu0
      %892 = vmatprep.mubr.bf16.mxu0 %v553
      %893 = vmatmul.mubr.bf16.gmra.mxu0 %v552
      %v894 = vpop.f32.mrf.mxu0
      %v895 = vadd.f32 %v330, %v894
      %v896 = vpop.f32.mrf.mxu0
      %v897 = vpop.f32.mrf.mxu0
      %v898 = vadd.f32 %v330, %v897
      %v899 = vpop.f32.mrf.mxu0
      %900 = vmatprep.mubr.bf16.mxu0 %v555
      %901 = vmatmul.mubr.bf16.gmra.mxu0 %v554
      %v902 = vpop.f32.mrf.mxu0
      %v903 = vadd.f32 %v330, %v902
      %v904 = vpop.f32.mrf.mxu0
      %v905 = vpop.f32.mrf.mxu0
      %v906 = vadd.f32 %v330, %v905
      %v907 = vpop.f32.mrf.mxu0
      %908 = vmatprep.mubr.bf16.mxu0 %v557
      %909 = vmatmul.mubr.bf16.gmra.mxu0 %v556
      %v910 = vpop.f32.mrf.mxu0
      %v911 = vadd.f32 %v330, %v910
      %v912 = vpop.f32.mrf.mxu0
      %v913 = vpop.f32.mrf.mxu0
      %v914 = vadd.f32 %v330, %v913
      %v915 = vpop.f32.mrf.mxu0
      %916 = vmatprep.mubr.bf16.mxu0 %v559
      %917 = vmatmul.mubr.bf16.gmra.mxu0 %v558
      %v918 = vpop.f32.mrf.mxu0
      %v919 = vadd.f32 %v330, %v918
      %v920 = vpop.f32.mrf.mxu0
      %v921 = vpop.f32.mrf.mxu0
      %v922 = vadd.f32 %v330, %v921
      %v923 = vpop.f32.mrf.mxu0
      %924 = vmatprep.mubr.bf16.mxu0 %v561
      %925 = vmatmul.mubr.bf16.gmra.mxu0 %v560
      %v926 = vpop.f32.mrf.mxu0
      %v927 = vadd.f32 %v330, %v926
      %v928 = vpop.f32.mrf.mxu0
      %v929 = vpop.f32.mrf.mxu0
      %v930 = vadd.f32 %v330, %v929
      %v931 = vpop.f32.mrf.mxu0
      %932 = vmatprep.mubr.bf16.mxu0 %v563
      %933 = vmatmul.mubr.bf16.gmra.mxu0 %v562
      %v934 = vpop.f32.mrf.mxu0
      %v935 = vadd.f32 %v330, %v934
      %v936 = vpop.f32.mrf.mxu0
      %v937 = vpop.f32.mrf.mxu0
      %v938 = vadd.f32 %v330, %v937
      %v939 = vpop.f32.mrf.mxu0
      %940 = vmatprep.mubr.bf16.mxu0 %v565
      %941 = vmatmul.mubr.bf16.gmra.mxu0 %v564
      %v942 = vpop.f32.mrf.mxu0
      %v943 = vadd.f32 %v330, %v942
      %v944 = vpop.f32.mrf.mxu0
      %v945 = vpop.f32.mrf.mxu0
      %v946 = vadd.f32 %v330, %v945
      %v947 = vpop.f32.mrf.mxu0
      %948 = vmatprep.mubr.bf16.mxu0 %v567
      %949 = vmatmul.mubr.bf16.gmra.mxu0 %v566
      %v950 = vpop.f32.mrf.mxu0
      %v951 = vadd.f32 %v330, %v950
      %v952 = vpop.f32.mrf.mxu0
      %v953 = vpop.f32.mrf.mxu0
      %v954 = vadd.f32 %v330, %v953
      %v955 = vpop.f32.mrf.mxu0
      %956 = vmatprep.mubr.bf16.mxu0 %v569
      %957 = vmatmul.mubr.bf16.gmra.mxu0 %v568
      %v958 = vpop.f32.mrf.mxu0
      %v959 = vadd.f32 %v330, %v958
      %v960 = vpop.f32.mrf.mxu0
      %v961 = vpop.f32.mrf.mxu0
      %v962 = vadd.f32 %v330, %v961
      %v963 = vpop.f32.mrf.mxu0
      %964 = vmatprep.mubr.bf16.mxu0 %v571
      %965 = vmatmul.mubr.bf16.gmra.mxu0 %v570
      %v966 = vpop.f32.mrf.mxu0
      %v967 = vadd.f32 %v330, %v966
      %v968 = vpop.f32.mrf.mxu0
      %v969 = vpop.f32.mrf.mxu0
      %v970 = vadd.f32 %v330, %v969
      %v971 = vpop.f32.mrf.mxu0
      %972 = vmatprep.mubr.bf16.mxu0 %v573
      %973 = vmatmul.mubr.bf16.gmra.mxu0 %v572
      %v974 = vpop.f32.mrf.mxu0
      %v975 = vadd.f32 %v330, %v974
      %v976 = vpop.f32.mrf.mxu0
      %v977 = vpop.f32.mrf.mxu0
      %v978 = vadd.f32 %v330, %v977
      %v979 = vpop.f32.mrf.mxu0
      %980 = vmatprep.mubr.bf16.mxu0 %v575
      %981 = vmatmul.mubr.bf16.gmra.mxu0 %v574
      %v982 = vpop.f32.mrf.mxu0
      %v983 = vadd.f32 %v330, %v982
      %v984 = vpop.f32.mrf.mxu0
      %v985 = vpop.f32.mrf.mxu0
      %v986 = vadd.f32 %v330, %v985
      %v987 = vpop.f32.mrf.mxu0
      %988 = vmatprep.mubr.bf16.mxu0 %v577
      %989 = vmatmul.mubr.bf16.gmra.mxu0 %v576
      %v990 = vpop.f32.mrf.mxu0
      %v991 = vadd.f32 %v330, %v990
      %v992 = vpop.f32.mrf.mxu0
      %v993 = vpop.f32.mrf.mxu0
      %v994 = vadd.f32 %v330, %v993
      %v995 = vpop.f32.mrf.mxu0
      %996 = vmatprep.mubr.bf16.mxu0 %v579
      %997 = vmatmul.mubr.bf16.gmra.mxu0 %v578
      %v998 = vpop.f32.mrf.mxu0
      %v999 = vadd.f32 %v330, %v998
      %v1000 = vpop.f32.mrf.mxu0
      %v1001 = vpop.f32.mrf.mxu0
      %v1002 = vadd.f32 %v330, %v1001
      %v1003 = vpop.f32.mrf.mxu0
      %1004 = vmatprep.mubr.bf16.mxu0 %v581
      %1005 = vmatmul.mubr.bf16.gmra.mxu0 %v580
      %v1006 = vpop.f32.mrf.mxu0
      %v1007 = vadd.f32 %v330, %v1006
      %v1008 = vpop.f32.mrf.mxu0
      %v1009 = vpop.f32.mrf.mxu0
      %v1010 = vadd.f32 %v330, %v1009
      %v1011 = vpop.f32.mrf.mxu0
      %1012 = vmatprep.mubr.bf16.mxu0 %v583
      %1013 = vmatmul.mubr.bf16.gmra.mxu0 %v582
      %v1014 = vpop.f32.mrf.mxu0
      %v1015 = vadd.f32 %v330, %v1014
      %v1016 = vpop.f32.mrf.mxu0
      %v1017 = vpop.f32.mrf.mxu0
      %v1018 = vadd.f32 %v330, %v1017
      %v1019 = vpop.f32.mrf.mxu0
      %1020 = vmatprep.mubr.bf16.mxu0 %v585
      %1021 = vmatmul.mubr.bf16.gmra.mxu0 %v584
      %v1022 = vpop.f32.mrf.mxu0
      %v1023 = vadd.f32 %v330, %v1022
      %v1024 = vpop.f32.mrf.mxu0
      %v1025 = vpop.f32.mrf.mxu0
      %v1026 = vadd.f32 %v330, %v1025
      %v1027 = vpop.f32.mrf.mxu0
      %1028 = vmatprep.mubr.bf16.mxu0 %v587
      %1029 = vmatmul.mubr.bf16.gmra.mxu0 %v586
      %v1030 = vpop.f32.mrf.mxu0
      %v1031 = vadd.f32 %v330, %v1030
      %v1032 = vpop.f32.mrf.mxu0
      %v1033 = vpop.f32.mrf.mxu0
      %v1034 = vadd.f32 %v330, %v1033
      %v1035 = vpop.f32.mrf.mxu0
      %1036 = vdwg.mxu0
      %v1037 = vmax.f32 %v783, 0.0
      %v1038 = vmax.f32 %v786, 0.0
      %v1039 = vmax.f32 %v791, 0.0
      %v1040 = vmax.f32 %v794, 0.0
      %v1041 = vmax.f32 %v799, 0.0
      %v1042 = vmax.f32 %v802, 0.0
      %v1043 = vmax.f32 %v807, 0.0
      %v1044 = vmax.f32 %v810, 0.0
      %v1045 = vmax.f32 %v815, 0.0
      %v1046 = vmax.f32 %v818, 0.0
      %v1047 = vmax.f32 %v823, 0.0
      %v1048 = vmax.f32 %v826, 0.0
      %v1049 = vmax.f32 %v831, 0.0
      %v1050 = vmax.f32 %v834, 0.0
      %v1051 = vmax.f32 %v839, 0.0
      %v1052 = vmax.f32 %v842, 0.0
      %v1053 = vmax.f32 %v847, 0.0
      %v1054 = vmax.f32 %v850, 0.0
      %v1055 = vmax.f32 %v855, 0.0
      %v1056 = vmax.f32 %v858, 0.0
      %v1057 = vmax.f32 %v863, 0.0
      %v1058 = vmax.f32 %v866, 0.0
      %v1059 = vmax.f32 %v871, 0.0
      %v1060 = vmax.f32 %v874, 0.0
      %v1061 = vmax.f32 %v879, 0.0
      %v1062 = vmax.f32 %v882, 0.0
      %v1063 = vmax.f32 %v887, 0.0
      %v1064 = vmax.f32 %v890, 0.0
      %v1065 = vmax.f32 %v895, 0.0
      %v1066 = vmax.f32 %v898, 0.0
      %v1067 = vmax.f32 %v903, 0.0
      %v1068 = vmax.f32 %v906, 0.0
      %v1069 = vmax.f32 %v911, 0.0
      %v1070 = vmax.f32 %v914, 0.0
      %v1071 = vmax.f32 %v919, 0.0
      %v1072 = vmax.f32 %v922, 0.0
      %v1073 = vmax.f32 %v927, 0.0
      %v1074 = vmax.f32 %v930, 0.0
      %v1075 = vmax.f32 %v935, 0.0
      %v1076 = vmax.f32 %v938, 0.0
      %v1077 = vmax.f32 %v943, 0.0
      %v1078 = vmax.f32 %v946, 0.0
      %v1079 = vmax.f32 %v951, 0.0
      %v1080 = vmax.f32 %v954, 0.0
      %v1081 = vmax.f32 %v959, 0.0
      %v1082 = vmax.f32 %v962, 0.0
      %v1083 = vmax.f32 %v967, 0.0
      %v1084 = vmax.f32 %v970, 0.0
      %v1085 = vmax.f32 %v975, 0.0
      %v1086 = vmax.f32 %v978, 0.0
      %v1087 = vmax.f32 %v983, 0.0
      %v1088 = vmax.f32 %v986, 0.0
      %v1089 = vmax.f32 %v991, 0.0
      %v1090 = vmax.f32 %v994, 0.0
      %v1091 = vmax.f32 %v999, 0.0
      %v1092 = vmax.f32 %v1002, 0.0
      %v1093 = vmax.f32 %v1007, 0.0
      %v1094 = vmax.f32 %v1010, 0.0
      %v1095 = vmax.f32 %v1015, 0.0
      %v1096 = vmax.f32 %v1018, 0.0
      %v1097 = vmax.f32 %v1023, 0.0
      %v1098 = vmax.f32 %v1026, 0.0
      %v1099 = vmax.f32 %v1031, 0.0
      %v1100 = vmax.f32 %v1034, 0.0
      %v1101 = vpack.c.bf16 %v1038, %v1037
      %v1102 = vpack.c.bf16 %v1040, %v1039
      %v1103 = vpack.c.bf16 %v1042, %v1041
      %v1104 = vpack.c.bf16 %v1044, %v1043
      %v1105 = vpack.c.bf16 %v1046, %v1045
      %v1106 = vpack.c.bf16 %v1048, %v1047
      %v1107 = vpack.c.bf16 %v1050, %v1049
      %v1108 = vpack.c.bf16 %v1052, %v1051
      %v1109 = vpack.c.bf16 %v1054, %v1053
      %v1110 = vpack.c.bf16 %v1056, %v1055
      %v1111 = vpack.c.bf16 %v1058, %v1057
      %v1112 = vpack.c.bf16 %v1060, %v1059
      %v1113 = vpack.c.bf16 %v1062, %v1061
      %v1114 = vpack.c.bf16 %v1064, %v1063
      %v1115 = vpack.c.bf16 %v1066, %v1065
      %v1116 = vpack.c.bf16 %v1068, %v1067
      %v1117 = vpack.c.bf16 %v1070, %v1069
      %v1118 = vpack.c.bf16 %v1072, %v1071
      %v1119 = vpack.c.bf16 %v1074, %v1073
      %v1120 = vpack.c.bf16 %v1076, %v1075
      %v1121 = vpack.c.bf16 %v1078, %v1077
      %v1122 = vpack.c.bf16 %v1080, %v1079
      %v1123 = vpack.c.bf16 %v1082, %v1081
      %v1124 = vpack.c.bf16 %v1084, %v1083
      %v1125 = vpack.c.bf16 %v1086, %v1085
      %v1126 = vpack.c.bf16 %v1088, %v1087
      %v1127 = vpack.c.bf16 %v1090, %v1089
      %v1128 = vpack.c.bf16 %v1092, %v1091
      %v1129 = vpack.c.bf16 %v1094, %v1093
      %v1130 = vpack.c.bf16 %v1096, %v1095
      %v1131 = vpack.c.bf16 %v1098, %v1097
      %v1132 = vpack.c.bf16 %v1100, %v1099
      %v1165 = vunpack.c.l.b16 %v1101
      %v1166 = vunpack.c.h.b16 %v1101
      %v1167 = vunpack.c.l.b16 %v1102
      %v1168 = vunpack.c.h.b16 %v1102
      %v1169 = vunpack.c.l.b16 %v1103
      %v1170 = vunpack.c.h.b16 %v1103
      %v1171 = vunpack.c.l.b16 %v1104
      %v1172 = vunpack.c.h.b16 %v1104
      %v1173 = vunpack.c.l.b16 %v1105
      %v1174 = vunpack.c.h.b16 %v1105
      %v1175 = vunpack.c.l.b16 %v1106
      %v1176 = vunpack.c.h.b16 %v1106
      %v1177 = vunpack.c.l.b16 %v1107
      %v1178 = vunpack.c.h.b16 %v1107
      %v1179 = vunpack.c.l.b16 %v1108
      %v1180 = vunpack.c.h.b16 %v1108
      %v1181 = vunpack.c.l.b16 %v1109
      %v1182 = vunpack.c.h.b16 %v1109
      %v1183 = vunpack.c.l.b16 %v1110
      %v1184 = vunpack.c.h.b16 %v1110
      %v1185 = vunpack.c.l.b16 %v1111
      %v1186 = vunpack.c.h.b16 %v1111
      %v1187 = vunpack.c.l.b16 %v1112
      %v1188 = vunpack.c.h.b16 %v1112
      %v1189 = vunpack.c.l.b16 %v1113
      %v1190 = vunpack.c.h.b16 %v1113
      %v1191 = vunpack.c.l.b16 %v1114
      %v1192 = vunpack.c.h.b16 %v1114
      %v1193 = vunpack.c.l.b16 %v1115
      %v1194 = vunpack.c.h.b16 %v1115
      %v1195 = vunpack.c.l.b16 %v1116
      %v1196 = vunpack.c.h.b16 %v1116
      %v1197 = vunpack.c.l.b16 %v1117
      %v1198 = vunpack.c.h.b16 %v1117
      %v1199 = vunpack.c.l.b16 %v1118
      %v1200 = vunpack.c.h.b16 %v1118
      %v1201 = vunpack.c.l.b16 %v1119
      %v1202 = vunpack.c.h.b16 %v1119
      %v1203 = vunpack.c.l.b16 %v1120
      %v1204 = vunpack.c.h.b16 %v1120
      %v1205 = vunpack.c.l.b16 %v1121
      %v1206 = vunpack.c.h.b16 %v1121
      %v1207 = vunpack.c.l.b16 %v1122
      %v1208 = vunpack.c.h.b16 %v1122
      %v1209 = vunpack.c.l.b16 %v1123
      %v1210 = vunpack.c.h.b16 %v1123
      %v1211 = vunpack.c.l.b16 %v1124
      %v1212 = vunpack.c.h.b16 %v1124
      %v1213 = vunpack.c.l.b16 %v1125
      %v1214 = vunpack.c.h.b16 %v1125
      %v1215 = vunpack.c.l.b16 %v1126
      %v1216 = vunpack.c.h.b16 %v1126
      %v1217 = vunpack.c.l.b16 %v1127
      %v1218 = vunpack.c.h.b16 %v1127
      %v1219 = vunpack.c.l.b16 %v1128
      %v1220 = vunpack.c.h.b16 %v1128
      %v1221 = vunpack.c.l.b16 %v1129
      %v1222 = vunpack.c.h.b16 %v1129
      %v1223 = vunpack.c.l.b16 %v1130
      %v1224 = vunpack.c.h.b16 %v1130
      %v1225 = vunpack.c.l.b16 %v1131
      %v1226 = vunpack.c.h.b16 %v1131
      %v1227 = vunpack.c.l.b16 %v1132
      %v1228 = vunpack.c.h.b16 %v1132
      %v1229 = vpack.c.b16 %v1165, %v1165
      %v1230 = vpack.c.b16 %v1166, %v1166
      %v1231 = vpack.c.b16 %v1167, %v1167
      %v1232 = vpack.c.b16 %v1168, %v1168
      %v1233 = vpack.c.b16 %v1169, %v1169
      %v1234 = vpack.c.b16 %v1170, %v1170
      %v1235 = vpack.c.b16 %v1171, %v1171
      %v1236 = vpack.c.b16 %v1172, %v1172
      %v1237 = vpack.c.b16 %v1173, %v1173
      %v1238 = vpack.c.b16 %v1174, %v1174
      %v1239 = vpack.c.b16 %v1175, %v1175
      %v1240 = vpack.c.b16 %v1176, %v1176
      %v1241 = vpack.c.b16 %v1177, %v1177
      %v1242 = vpack.c.b16 %v1178, %v1178
      %v1243 = vpack.c.b16 %v1179, %v1179
      %v1244 = vpack.c.b16 %v1180, %v1180
      %v1245 = vpack.c.b16 %v1181, %v1181
      %v1246 = vpack.c.b16 %v1182, %v1182
      %v1247 = vpack.c.b16 %v1183, %v1183
      %v1248 = vpack.c.b16 %v1184, %v1184
      %v1249 = vpack.c.b16 %v1185, %v1185
      %v1250 = vpack.c.b16 %v1186, %v1186
      %v1251 = vpack.c.b16 %v1187, %v1187
      %v1252 = vpack.c.b16 %v1188, %v1188
      %v1253 = vpack.c.b16 %v1189, %v1189
      %v1254 = vpack.c.b16 %v1190, %v1190
      %v1255 = vpack.c.b16 %v1191, %v1191
      %v1256 = vpack.c.b16 %v1192, %v1192
      %v1257 = vpack.c.b16 %v1193, %v1193
      %v1258 = vpack.c.b16 %v1194, %v1194
      %v1259 = vpack.c.b16 %v1195, %v1195
      %v1260 = vpack.c.b16 %v1196, %v1196
      %v1261 = vpack.c.b16 %v1197, %v1197
      %v1262 = vpack.c.b16 %v1198, %v1198
      %v1263 = vpack.c.b16 %v1199, %v1199
      %v1264 = vpack.c.b16 %v1200, %v1200
      %v1265 = vpack.c.b16 %v1201, %v1201
      %v1266 = vpack.c.b16 %v1202, %v1202
      %v1267 = vpack.c.b16 %v1203, %v1203
      %v1268 = vpack.c.b16 %v1204, %v1204
      %v1269 = vpack.c.b16 %v1205, %v1205
      %v1270 = vpack.c.b16 %v1206, %v1206
      %v1271 = vpack.c.b16 %v1207, %v1207
      %v1272 = vpack.c.b16 %v1208, %v1208
      %v1273 = vpack.c.b16 %v1209, %v1209
      %v1274 = vpack.c.b16 %v1210, %v1210
      %v1275 = vpack.c.b16 %v1211, %v1211
      %v1276 = vpack.c.b16 %v1212, %v1212
      %v1277 = vpack.c.b16 %v1213, %v1213
      %v1278 = vpack.c.b16 %v1214, %v1214
      %v1279 = vpack.c.b16 %v1215, %v1215
      %v1280 = vpack.c.b16 %v1216, %v1216
      %v1281 = vpack.c.b16 %v1217, %v1217
      %v1282 = vpack.c.b16 %v1218, %v1218
      %v1283 = vpack.c.b16 %v1219, %v1219
      %v1284 = vpack.c.b16 %v1220, %v1220
      %v1285 = vpack.c.b16 %v1221, %v1221
      %v1286 = vpack.c.b16 %v1222, %v1222
      %v1287 = vpack.c.b16 %v1223, %v1223
      %v1288 = vpack.c.b16 %v1224, %v1224
      %v1289 = vpack.c.b16 %v1225, %v1225
      %v1290 = vpack.c.b16 %v1226, %v1226
      %v1291 = vpack.c.b16 %v1227, %v1227
      %v1292 = vpack.c.b16 %v1228, %v1228
      %1357 = vst [vmem:[%s226] sm:$0xf] %v1229
      %1358 = vst [vmem:[%s226 + $0x4] sm:$0xf] %v1230
      %1359 = vst [vmem:[%s226 + $0x8] sm:$0xf] %v1231
      %1360 = vst [vmem:[%s226 + $0xc] sm:$0xf] %v1232
      %1361 = vst [vmem:[%s226 + $0x10] sm:$0xf] %v1233
      %1362 = vst [vmem:[%s226 + $0x14] sm:$0xf] %v1234
      %1363 = vst [vmem:[%s226 + $0x18] sm:$0xf] %v1235
      %1364 = vst [vmem:[%s226 + $0x1c] sm:$0xf] %v1236
      %1365 = vst [vmem:[%s226 + $0x20] sm:$0xf] %v1237
      %1366 = vst [vmem:[%s226 + $0x24] sm:$0xf] %v1238
      %1367 = vst [vmem:[%s226 + $0x28] sm:$0xf] %v1239
      %1368 = vst [vmem:[%s226 + $0x2c] sm:$0xf] %v1240
      %1369 = vst [vmem:[%s226 + $0x30] sm:$0xf] %v1241
      %1370 = vst [vmem:[%s226 + $0x34] sm:$0xf] %v1242
      %1371 = vst [vmem:[%s226 + $0x38] sm:$0xf] %v1243
      %1372 = vst [vmem:[%s226 + $0x3c] sm:$0xf] %v1244
      %1373 = vst [vmem:[%s226 + $0x40] sm:$0xf] %v1245
      %1374 = vst [vmem:[%s226 + $0x44] sm:$0xf] %v1246
      %1375 = vst [vmem:[%s226 + $0x48] sm:$0xf] %v1247
      %1376 = vst [vmem:[%s226 + $0x4c] sm:$0xf] %v1248
      %1377 = vst [vmem:[%s226 + $0x50] sm:$0xf] %v1249
      %1378 = vst [vmem:[%s226 + $0x54] sm:$0xf] %v1250
      %1379 = vst [vmem:[%s226 + $0x58] sm:$0xf] %v1251
      %1380 = vst [vmem:[%s226 + $0x5c] sm:$0xf] %v1252
      %1381 = vst [vmem:[%s226 + $0x60] sm:$0xf] %v1253
      %1382 = vst [vmem:[%s226 + $0x64] sm:$0xf] %v1254
      %1383 = vst [vmem:[%s226 + $0x68] sm:$0xf] %v1255
      %1384 = vst [vmem:[%s226 + $0x6c] sm:$0xf] %v1256
      %1385 = vst [vmem:[%s226 + $0x70] sm:$0xf] %v1257
      %1386 = vst [vmem:[%s226 + $0x74] sm:$0xf] %v1258
      %1387 = vst [vmem:[%s226 + $0x78] sm:$0xf] %v1259
      %1388 = vst [vmem:[%s226 + $0x7c] sm:$0xf] %v1260
      %1389 = vst [vmem:[%s226 + $0x80] sm:$0xf] %v1261
      %1390 = vst [vmem:[%s226 + $0x84] sm:$0xf] %v1262
      %1391 = vst [vmem:[%s226 + $0x88] sm:$0xf] %v1263
      %1392 = vst [vmem:[%s226 + $0x8c] sm:$0xf] %v1264
      %1393 = vst [vmem:[%s226 + $0x90] sm:$0xf] %v1265
      %1394 = vst [vmem:[%s226 + $0x94] sm:$0xf] %v1266
      %1395 = vst [vmem:[%s226 + $0x98] sm:$0xf] %v1267
      %1396 = vst [vmem:[%s226 + $0x9c] sm:$0xf] %v1268
      %1397 = vst [vmem:[%s226 + $0xa0] sm:$0xf] %v1269
      %1398 = vst [vmem:[%s226 + $0xa4] sm:$0xf] %v1270
      %1399 = vst [vmem:[%s226 + $0xa8] sm:$0xf] %v1271
      %1400 = vst [vmem:[%s226 + $0xac] sm:$0xf] %v1272
      %1401 = vst [vmem:[%s226 + $0xb0] sm:$0xf] %v1273
      %1402 = vst [vmem:[%s226 + $0xb4] sm:$0xf] %v1274
      %1403 = vst [vmem:[%s226 + $0xb8] sm:$0xf] %v1275
      %1404 = vst [vmem:[%s226 + $0xbc] sm:$0xf] %v1276
      %1405 = vst [vmem:[%s226 + $0xc0] sm:$0xf] %v1277
      %1406 = vst [vmem:[%s226 + $0xc4] sm:$0xf] %v1278
      %1407 = vst [vmem:[%s226 + $0xc8] sm:$0xf] %v1279
      %1408 = vst [vmem:[%s226 + $0xcc] sm:$0xf] %v1280
      %1409 = vst [vmem:[%s226 + $0xd0] sm:$0xf] %v1281
      %1410 = vst [vmem:[%s226 + $0xd4] sm:$0xf] %v1282
      %1411 = vst [vmem:[%s226 + $0xd8] sm:$0xf] %v1283
      %1412 = vst [vmem:[%s226 + $0xdc] sm:$0xf] %v1284
      %1413 = vst [vmem:[%s226 + $0xe0] sm:$0xf] %v1285
      %1414 = vst [vmem:[%s226 + $0xe4] sm:$0xf] %v1286
      %1415 = vst [vmem:[%s226 + $0xe8] sm:$0xf] %v1287
      %1416 = vst [vmem:[%s226 + $0xec] sm:$0xf] %v1288
      %1417 = vst [vmem:[%s226 + $0xf0] sm:$0xf] %v1289
      %1418 = vst [vmem:[%s226 + $0xf4] sm:$0xf] %v1290
      %1419 = vst [vmem:[%s226 + $0xf8] sm:$0xf] %v1291
      %1420 = vst [vmem:[%s226 + $0xfc] sm:$0xf] %v1292
      %s1421 = smul.u32 64, %s18
      %p1422 = scmp.lt.s32.totalorder %s1421, 4223
      %s1423 = scalar_select %p1422, %s1421, 4223
      %p1424 = scmp.lt.s32.totalorder %s19, 0
      %s1425 = scalar_select %p1424, %s19, 0
      %s1426 = sadd.s32 %s1425, %s1423
      %s1427 = smul.addr %s1426, 4
      %s1428 = scalar_lea.vmem %s3, %s1427
      // Predicated region
      $region33: #{conv_im2col.1} parent=31 // pred_check
        %p1429 = pneg %p124
      $region34: #{conv_im2col.1} parent=31 // pred_check_branch
        %1431 = sbr.rel (%p1429) target = $region36
      $region35: #{conv_im2col.1} parent=31 // pred_region
        %s1432 = smul.u32 64, %s18
      $region36: #{conv_im2col.1} parent=31 // pred_fallthru
        _
    $region32: #{conv_im2col.1} parent=5 // pred_fallthru
      _
    %p1433 = scmp.le.s32.totalorder 2, %s9
    // Predicated region
    $region37: #{conv_im2col.1} parent=5 // pred_check
      %p1434 = pneg %p1433
    $region38: #{conv_im2col.1} parent=5 // pred_check_branch
      %1436 = sbr.rel (%p1434) target = $region40
    $region39: #{conv_im2col.1} parent=5 // pred_region
      %s1437 = ssub.s32 %s9, 2
      // Predicated region
      $region41: #{conv_im2col.1} parent=39 // pred_check
        %p1438 = pneg %p130
      $region42: #{conv_im2col.1} parent=39 // pred_check_branch
        %1440 = sbr.rel (%p1438) target = $region44
      $region43: #{conv_im2col.1} parent=39 // pred_region
        %s1441 = smul.u32 64, %s20
        %p1442 = scmp.lt.s32.totalorder %s1441, 4223
        %s1443 = scalar_select %p1442, %s1441, 4223
        %p1444 = scmp.lt.s32.totalorder %s21, 0
        %s1445 = scalar_select %p1444, %s21, 0
        %s1446 = sadd.s32 %s1445, %s1443
        %s1447 = smul.addr %s1446, 4
        %s1448 = scalar_lea.vmem %s3, %s1447
      $region44: #{conv_im2col.1} parent=39 // pred_fallthru
        _
    $region40: #{conv_im2col.1} parent=5 // pred_fallthru
      _
  $region6: #{conv_im2col.1} parent=0 // loop_footer
    %s13 = sadd.s32 1, %s9
  $region7: #{conv_im2col.1} parent=0 // loop_footer_branch
    %8 = sbr.rel target = $region3
  $region8: #{conv_im2col.1} parent=0 // loop_exit
    _

</llo_original>
